<compile_context>
chip_gen: v5e
topology: v5e:2x2
jax: 0.10.0
libtpu: 0.0.40
codegen_flags: <defaults>
</compile_context>

<pallas_src>
import functools

import jax
import jax.numpy as jnp
from jax.experimental import pallas as pl
from jax.experimental.pallas import tpu as pltpu


def lca_kernel(x_ref, w1_ref, b1_ref, w2_ref, b2_ref, w3_ref, b3_ref, o_ref,
               *, length, channels, packed):
    """One batch per grid step: x_ref is (1, L, Cp) f32."""
    L, C = length, channels
    x = x_ref[0]                                        # (L, Cp) f32

    # Per-batch boundary masks: one (L, 1) row-iota compare, reused by both convs.
    row = jax.lax.broadcasted_iota(jnp.int32, (L, 1), 0)
    first = row == 0
    last = row == (L - 1)

    def conv3(a, w_ref, b_ref):
        # Conv1d(k=3, padding=1) as a single im2col matmul.
        a_prev = jnp.where(first, 0.0, pltpu.roll(a, shift=1, axis=0))
        a_next = jnp.where(last, 0.0, pltpu.roll(a, shift=L - 1, axis=0))
        if packed:
            # 3*C <= Cp: pack the real channels of [prev | center | next] into
            # one lane tile via lane rolls + adds (padded channels are zero),
            # so the contraction dim is a single 128-lane tile.
            cat = (a_prev
                   + pltpu.roll(a, shift=C, axis=1)
                   + pltpu.roll(a_next, shift=2 * C, axis=1))     # (L, Cp)
        else:
            cat = jnp.concatenate([a_prev, a, a_next], axis=1)    # (L, 3*Cp)
        return (jnp.dot(cat.astype(jnp.bfloat16), w_ref[...],
                        preferred_element_type=jnp.float32)
                + b_ref[...])

    # proj_1 + leaky_relu (negative_slope = 0.01, PyTorch default)
    h = conv3(x, w1_ref, b1_ref)
    x1 = jnp.where(h > 0, h, 0.01 * h)

    # proj_3: AdaptiveAvgPool1d(1) -> Conv1d(k=1); per-batch mean over L, one k=1 dot.
    pooled = jnp.mean(x1, axis=0, keepdims=True)                  # (1, Cp)
    z = (jnp.dot(pooled.astype(jnp.bfloat16), w3_ref[...],
                 preferred_element_type=jnp.float32)
         + b3_ref[...])                                           # (1, Cp)

    # channel re-weighting, proj_2, residual
    y = x1 * z
    y2 = conv3(y, w2_ref, b2_ref)
    o_ref[0] = (x + y2).astype(o_ref.dtype)


def lca_forward(x_ncl, w1, b1, w2, b2, w3, b3):
    """x_ncl: (B, C, L) f32. wX: PyTorch Conv1d weights (Cout, Cin, K). bX: (C,)."""
    B, C, L = x_ncl.shape
    Cp = ((C + 127) // 128) * 128               # lane-dense channel padding
    pc = Cp - C
    packed = 3 * C <= Cp                        # im2col fits one lane tile
    Ck = Cp if packed else 3 * Cp               # im2col contraction width

    def k3_weight(w):                           # (Cout, Cin, 3) -> (Ck, Cp) bf16
        wt = jnp.transpose(w, (2, 1, 0))        # (K, Cin, Cout); tap 0 = prev
        if packed:
            wk = jnp.zeros((Ck, Cp), jnp.float32)
            for k in range(3):
                wk = wk.at[k * C:(k + 1) * C, :C].set(wt[k])
        else:
            wk = jnp.pad(wt, ((0, 0), (0, pc), (0, pc))).reshape(Ck, Cp)
        return wk.astype(jnp.bfloat16)

    def k1_weight(w):                           # (Cout, Cin, 1) -> (Cp, Cp) bf16
        return jnp.pad(w[:, :, 0].T, ((0, pc), (0, pc))).astype(jnp.bfloat16)

    def bias(b):                                # (C,) -> (1, Cp) f32
        return jnp.pad(b, (0, pc)).astype(jnp.float32)[None, :]

    # (B, C, L) -> (B, L, Cp), zero channel padding (lane-dense, unmasked stores)
    x_pad = jnp.pad(jnp.transpose(x_ncl, (0, 2, 1)), ((0, 0), (0, 0), (0, pc)))

    # Per-step VMEM: double-buffered x/out tiles + resident weights + temporaries.
    # v7x has 64 MiB physical VMEM (vs 128 on v5e/v6e) — stay well under.
    tile_bytes = L * Cp * 4
    weight_bytes = (2 * Ck * Cp + Cp * Cp) * 2 + 3 * Cp * 4
    vmem_limit = int(min(48 * 2 ** 20,
                         max(16 * 2 ** 20, 16 * tile_bytes + 2 * weight_bytes)))

    cost = pl.CostEstimate(
        flops=int(B * (2 * 2 * L * Ck * Cp + 2 * Cp * Cp)),
        transcendentals=0,
        bytes_accessed=int(2 * B * L * Cp * 4 + weight_bytes),
    )

    const = lambda shape: pl.BlockSpec(shape, lambda b: (0,) * len(shape))
    # TODO(synk): for production L where a whole (L, Cp) batch slab no longer fits
    # VMEM, additionally tile L with a 1-row halo and a two-pass mean/accumulator.
    out_pad = pl.pallas_call(
        functools.partial(lca_kernel, length=L, channels=C, packed=packed),
        out_shape=jax.ShapeDtypeStruct((B, L, Cp), x_pad.dtype),
        grid_spec=pltpu.PrefetchScalarGridSpec(
            num_scalar_prefetch=0,
            grid=(B,),                          # one batch per step
            in_specs=[
                pl.BlockSpec((1, L, Cp), lambda b: (b, 0, 0)),   # x (per batch)
                const((Ck, Cp)), const((1, Cp)),                 # proj_1 W, b
                const((Ck, Cp)), const((1, Cp)),                 # proj_2 W, b
                const((Cp, Cp)), const((1, Cp)),                 # proj_3 W, b
            ],
            out_specs=pl.BlockSpec((1, L, Cp), lambda b: (b, 0, 0)),
        ),
        input_output_aliases={0: 0},            # residual output overwrites x in HBM
        compiler_params=pltpu.CompilerParams(
            dimension_semantics=("parallel",),  # v7x: shard batches over both TCs
            vmem_limit_bytes=vmem_limit),
        cost_estimate=cost,
    )(x_pad, k3_weight(w1), bias(b1), k3_weight(w2), bias(b2),
      k1_weight(w3), bias(b3))

    out = out_pad[:, :, :C]
    return jnp.transpose(out, (0, 2, 1))        # back to (B, C, L)


def lca_reference(x_ncl, w1, b1, w2, b2, w3, b3):
    """Plain-JAX reference with PyTorch (Cout, Cin, K) conv weights, NCL input."""
    def conv1d(a, w, b, pad):
        out = jax.lax.conv_general_dilated(
            a, w, window_strides=(1,), padding=[(pad, pad)],
            dimension_numbers=("NCH", "OIH", "NCH"))
        return out + b[None, :, None]
    h = conv1d(x_ncl, w1, b1, 1)
    x1 = jnp.where(h > 0, h, 0.01 * h)
    pooled = jnp.mean(x1, axis=2, keepdims=True)
    y = conv1d(pooled, w3, b3, 0)
    y = x1 * y
    y = conv1d(y, w2, b2, 1)
    return x_ncl + y


if __name__ == "__main__":
    B, C, L = 2, 32, 16          # batch, d_model, sequence length
    key = jax.random.PRNGKey(0)
    kx, k1, k2, k3, kb1, kb2, kb3 = jax.random.split(key, 7)

    # PyTorch-layout parameters, deterministic init.
    x_ncl = jax.random.normal(kx, (B, C, L), jnp.float32)
    w1 = jax.random.normal(k1, (C, C, 3), jnp.float32) * 0.1   # (Cout, Cin, K)
    w2 = jax.random.normal(k2, (C, C, 3), jnp.float32) * 0.1
    w3 = jax.random.normal(k3, (C, C, 1), jnp.float32) * 0.1
    b1 = jax.random.normal(kb1, (C,), jnp.float32) * 0.1
    b2 = jax.random.normal(kb2, (C,), jnp.float32) * 0.1
    b3 = jax.random.normal(kb3, (C,), jnp.float32) * 0.1

    out = jax.block_until_ready(
        jax.jit(lca_forward)(x_ncl, w1, b1, w2, b2, w3, b3))
    ref = lca_reference(x_ncl, w1, b1, w2, b2, w3, b3)

    assert out.shape == (B, C, L)
    err = float(jnp.max(jnp.abs(out - ref)))
    # bf16 MXU operands (f32 accumulation): validate at bf16-appropriate tolerance.
    assert jnp.allclose(out, ref, atol=5e-2, rtol=5e-2), err
    print("KERNEL_OK")
</pallas_src>

<mosaic_0001>
module attributes {stable_mosaic.version = 11 : i64} {
  func.func @lca_kernel(%arg0: i32, %arg1: memref<1x16x128xf32, #tpu.memory_space<vmem>>, %arg2: memref<128x128xbf16, #tpu.memory_space<vmem>>, %arg3: memref<1x128xf32, #tpu.memory_space<vmem>>, %arg4: memref<128x128xbf16, #tpu.memory_space<vmem>>, %arg5: memref<1x128xf32, #tpu.memory_space<vmem>>, %arg6: memref<128x128xbf16, #tpu.memory_space<vmem>>, %arg7: memref<1x128xf32, #tpu.memory_space<vmem>>, %arg8: memref<1x16x128xf32, #tpu.memory_space<vmem>>) attributes {dimension_semantics = [#tpu.dimension_semantics<parallel>], iteration_bounds = array<i64: 2>, scalar_prefetch = 0 : i64, scratch_operands = 0 : i64, tpu.core_type = #tpu.core_type<tc>, window_params = [{transform_indices = @transform_0, window_bounds = array<i64: 1, 16, 128>}, {pipeline_mode = #tpu.pipeline_mode<synchronous>, transform_indices = @transform_1, window_bounds = array<i64: 128, 128>}, {pipeline_mode = #tpu.pipeline_mode<synchronous>, transform_indices = @transform_2, window_bounds = array<i64: 1, 128>}, {pipeline_mode = #tpu.pipeline_mode<synchronous>, transform_indices = @transform_3, window_bounds = array<i64: 128, 128>}, {pipeline_mode = #tpu.pipeline_mode<synchronous>, transform_indices = @transform_4, window_bounds = array<i64: 1, 128>}, {pipeline_mode = #tpu.pipeline_mode<synchronous>, transform_indices = @transform_5, window_bounds = array<i64: 128, 128>}, {pipeline_mode = #tpu.pipeline_mode<synchronous>, transform_indices = @transform_6, window_bounds = array<i64: 1, 128>}, {transform_indices = @transform_7, window_bounds = array<i64: 1, 16, 128>}]} {
    %c0 = arith.constant 0 : index
    %c0_0 = arith.constant 0 : index
    %c0_1 = arith.constant 0 : index
    %0 = vector.load %arg1[%c0, %c0_0, %c0_1] : memref<1x16x128xf32, #tpu.memory_space<vmem>>, vector<1x16x128xf32>
    %1 = vector.shape_cast %0 : vector<1x16x128xf32> to vector<16x128xf32>
    %2 = tpu.iota {dimensions = array<i32: 0>} : vector<16x1xi32>
    %c0_i32 = arith.constant 0 : i32
    %3 = vector.broadcast %c0_i32 : i32 to vector<16x1xi32>
    %4 = arith.cmpi eq, %2, %3 : vector<16x1xi32>
    %c15_i32 = arith.constant 15 : i32
    %5 = vector.broadcast %c15_i32 : i32 to vector<16x1xi32>
    %6 = arith.cmpi eq, %2, %5 : vector<16x1xi32>
    %c1_i32 = arith.constant 1 : i32
    %7 = tpu.dynamic_rotate %1 by %c1_i32 dim 0 : vector<16x128xf32>, i32 -> vector<16x128xf32>
    %cst = arith.constant 0.000000e+00 : f32
    %8 = vector.shape_cast %4 : vector<16x1xi1> to vector<16x1xi1>
    %9 = vector.broadcast %8 : vector<16x1xi1> to vector<16x128xi1>
    %10 = vector.broadcast %cst : f32 to vector<16x128xf32>
    %11 = arith.select %9, %10, %7 : vector<16x128xi1>, vector<16x128xf32>
    %c15_i32_2 = arith.constant 15 : i32
    %12 = tpu.dynamic_rotate %1 by %c15_i32_2 dim 0 : vector<16x128xf32>, i32 -> vector<16x128xf32>
    %cst_3 = arith.constant 0.000000e+00 : f32
    %13 = vector.shape_cast %6 : vector<16x1xi1> to vector<16x1xi1>
    %14 = vector.broadcast %13 : vector<16x1xi1> to vector<16x128xi1>
    %15 = vector.broadcast %cst_3 : f32 to vector<16x128xf32>
    %16 = arith.select %14, %15, %12 : vector<16x128xi1>, vector<16x128xf32>
    %c32_i32 = arith.constant 32 : i32
    %17 = tpu.dynamic_rotate %1 by %c32_i32 dim 1 : vector<16x128xf32>, i32 -> vector<16x128xf32>
    %18 = arith.addf %11, %17 : vector<16x128xf32>
    %c64_i32 = arith.constant 64 : i32
    %19 = tpu.dynamic_rotate %16 by %c64_i32 dim 1 : vector<16x128xf32>, i32 -> vector<16x128xf32>
    %20 = arith.addf %18, %19 : vector<16x128xf32>
    %21 = arith.truncf %20 : vector<16x128xf32> to vector<16x128xbf16>
    %c0_4 = arith.constant 0 : index
    %c0_5 = arith.constant 0 : index
    %22 = vector.load %arg2[%c0_4, %c0_5] : memref<128x128xbf16, #tpu.memory_space<vmem>>, vector<128x128xbf16>
    %cst_6 = arith.constant dense<0.000000e+00> : vector<16x128xf32>
    %23 = tpu.matmul %21, %22, %cst_6 {dimension_numbers = #tpu.dot_dimension_numbers<[1], [0], [0], [1], [0, 0, 1, 1], [], []>} : vector<16x128xbf16>, vector<128x128xbf16>, vector<16x128xf32> -> vector<16x128xf32>
    %c0_7 = arith.constant 0 : index
    %c0_8 = arith.constant 0 : index
    %24 = vector.load %arg3[%c0_7, %c0_8] : memref<1x128xf32, #tpu.memory_space<vmem>>, vector<1x128xf32>
    %25 = vector.broadcast %24 : vector<1x128xf32> to vector<16x128xf32>
    %26 = arith.addf %23, %25 : vector<16x128xf32>
    %cst_9 = arith.constant 0.000000e+00 : f32
    %27 = vector.broadcast %cst_9 : f32 to vector<16x128xf32>
    %28 = arith.cmpf ogt, %26, %27 : vector<16x128xf32>
    %cst_10 = arith.constant 0.00999999977 : f32
    %29 = vector.broadcast %cst_10 : f32 to vector<16x128xf32>
    %30 = arith.mulf %29, %26 : vector<16x128xf32>
    %31 = arith.select %28, %26, %30 : vector<16x128xi1>, vector<16x128xf32>
    %cst_11 = arith.constant dense<0.000000e+00> : vector<128xf32>
    %32 = vector.multi_reduction <add>, %31, %cst_11 [0] : vector<16x128xf32> to vector<128xf32>
    %33 = vector.shape_cast %32 : vector<128xf32> to vector<1x128xf32>
    %cst_12 = arith.constant 1.600000e+01 : f32
    %34 = vector.broadcast %cst_12 : f32 to vector<1x128xf32>
    %35 = arith.divf %33, %34 : vector<1x128xf32>
    %36 = arith.truncf %35 : vector<1x128xf32> to vector<1x128xbf16>
    %c0_13 = arith.constant 0 : index
    %c0_14 = arith.constant 0 : index
    %37 = vector.load %arg6[%c0_13, %c0_14] : memref<128x128xbf16, #tpu.memory_space<vmem>>, vector<128x128xbf16>
    %cst_15 = arith.constant dense<0.000000e+00> : vector<1x128xf32>
    %38 = tpu.matmul %36, %37, %cst_15 {dimension_numbers = #tpu.dot_dimension_numbers<[1], [0], [0], [1], [0, 0, 1, 1], [], []>} : vector<1x128xbf16>, vector<128x128xbf16>, vector<1x128xf32> -> vector<1x128xf32>
    %c0_16 = arith.constant 0 : index
    %c0_17 = arith.constant 0 : index
    %39 = vector.load %arg7[%c0_16, %c0_17] : memref<1x128xf32, #tpu.memory_space<vmem>>, vector<1x128xf32>
    %40 = arith.addf %38, %39 : vector<1x128xf32>
    %41 = vector.broadcast %40 : vector<1x128xf32> to vector<16x128xf32>
    %42 = arith.mulf %31, %41 : vector<16x128xf32>
    %c1_i32_18 = arith.constant 1 : i32
    %43 = tpu.dynamic_rotate %42 by %c1_i32_18 dim 0 : vector<16x128xf32>, i32 -> vector<16x128xf32>
    %cst_19 = arith.constant 0.000000e+00 : f32
    %44 = vector.shape_cast %4 : vector<16x1xi1> to vector<16x1xi1>
    %45 = vector.broadcast %44 : vector<16x1xi1> to vector<16x128xi1>
    %46 = vector.broadcast %cst_19 : f32 to vector<16x128xf32>
    %47 = arith.select %45, %46, %43 : vector<16x128xi1>, vector<16x128xf32>
    %c15_i32_20 = arith.constant 15 : i32
    %48 = tpu.dynamic_rotate %42 by %c15_i32_20 dim 0 : vector<16x128xf32>, i32 -> vector<16x128xf32>
    %cst_21 = arith.constant 0.000000e+00 : f32
    %49 = vector.shape_cast %6 : vector<16x1xi1> to vector<16x1xi1>
    %50 = vector.broadcast %49 : vector<16x1xi1> to vector<16x128xi1>
    %51 = vector.broadcast %cst_21 : f32 to vector<16x128xf32>
    %52 = arith.select %50, %51, %48 : vector<16x128xi1>, vector<16x128xf32>
    %c32_i32_22 = arith.constant 32 : i32
    %53 = tpu.dynamic_rotate %42 by %c32_i32_22 dim 1 : vector<16x128xf32>, i32 -> vector<16x128xf32>
    %54 = arith.addf %47, %53 : vector<16x128xf32>
    %c64_i32_23 = arith.constant 64 : i32
    %55 = tpu.dynamic_rotate %52 by %c64_i32_23 dim 1 : vector<16x128xf32>, i32 -> vector<16x128xf32>
    %56 = arith.addf %54, %55 : vector<16x128xf32>
    %57 = arith.truncf %56 : vector<16x128xf32> to vector<16x128xbf16>
    %c0_24 = arith.constant 0 : index
    %c0_25 = arith.constant 0 : index
    %58 = vector.load %arg4[%c0_24, %c0_25] : memref<128x128xbf16, #tpu.memory_space<vmem>>, vector<128x128xbf16>
    %cst_26 = arith.constant dense<0.000000e+00> : vector<16x128xf32>
    %59 = tpu.matmul %57, %58, %cst_26 {dimension_numbers = #tpu.dot_dimension_numbers<[1], [0], [0], [1], [0, 0, 1, 1], [], []>} : vector<16x128xbf16>, vector<128x128xbf16>, vector<16x128xf32> -> vector<16x128xf32>
    %c0_27 = arith.constant 0 : index
    %c0_28 = arith.constant 0 : index
    %60 = vector.load %arg5[%c0_27, %c0_28] : memref<1x128xf32, #tpu.memory_space<vmem>>, vector<1x128xf32>
    %61 = vector.broadcast %60 : vector<1x128xf32> to vector<16x128xf32>
    %62 = arith.addf %59, %61 : vector<16x128xf32>
    %63 = arith.addf %1, %62 : vector<16x128xf32>
    %c0_29 = arith.constant 0 : index
    %c0_30 = arith.constant 0 : index
    %c0_31 = arith.constant 0 : index
    %64 = vector.load %arg8[%c0_29, %c0_30, %c0_31] : memref<1x16x128xf32, #tpu.memory_space<vmem>>, vector<1x16x128xf32>
    %65 = vector.shape_cast %64 : vector<1x16x128xf32> to vector<16x128xf32>
    %66 = vector.shape_cast %63 : vector<16x128xf32> to vector<1x16x128xf32>
    tpu.vector_store %arg8[%c0_29, %c0_30, %c0_31], %66 {strides = array<i32>} : memref<1x16x128xf32, #tpu.memory_space<vmem>>, vector<1x16x128xf32>,
    return
  }
  func.func @transform_0(%arg0: i32) -> (i32, i32, i32) {
    %c0_i32 = arith.constant 0 : i32
    %c0_i32_0 = arith.constant 0 : i32
    %c0_i32_1 = arith.constant 0 : i32
    return %arg0, %c0_i32, %c0_i32_0 : i32, i32, i32
  }
  func.func @transform_1(%arg0: i32) -> (i32, i32) {
    %c0_i32 = arith.constant 0 : i32
    %c0_i32_0 = arith.constant 0 : i32
    %c0_i32_1 = arith.constant 0 : i32
    return %c0_i32, %c0_i32_0 : i32, i32
  }
  func.func @transform_2(%arg0: i32) -> (i32, i32) {
    %c0_i32 = arith.constant 0 : i32
    %c0_i32_0 = arith.constant 0 : i32
    %c0_i32_1 = arith.constant 0 : i32
    return %c0_i32, %c0_i32_0 : i32, i32
  }
  func.func @transform_3(%arg0: i32) -> (i32, i32) {
    %c0_i32 = arith.constant 0 : i32
    %c0_i32_0 = arith.constant 0 : i32
    %c0_i32_1 = arith.constant 0 : i32
    return %c0_i32, %c0_i32_0 : i32, i32
  }
  func.func @transform_4(%arg0: i32) -> (i32, i32) {
    %c0_i32 = arith.constant 0 : i32
    %c0_i32_0 = arith.constant 0 : i32
    %c0_i32_1 = arith.constant 0 : i32
    return %c0_i32, %c0_i32_0 : i32, i32
  }
  func.func @transform_5(%arg0: i32) -> (i32, i32) {
    %c0_i32 = arith.constant 0 : i32
    %c0_i32_0 = arith.constant 0 : i32
    %c0_i32_1 = arith.constant 0 : i32
    return %c0_i32, %c0_i32_0 : i32, i32
  }
  func.func @transform_6(%arg0: i32) -> (i32, i32) {
    %c0_i32 = arith.constant 0 : i32
    %c0_i32_0 = arith.constant 0 : i32
    %c0_i32_1 = arith.constant 0 : i32
    return %c0_i32, %c0_i32_0 : i32, i32
  }
  func.func @transform_7(%arg0: i32) -> (i32, i32, i32) {
    %c0_i32 = arith.constant 0 : i32
    %c0_i32_0 = arith.constant 0 : i32
    %c0_i32_1 = arith.constant 0 : i32
    return %arg0, %c0_i32, %c0_i32_0 : i32, i32, i32
  }
}

</mosaic_0001>

<llo_original>
// kernel: lca_forward.1
$region0: #{lca_forward.1}
  #allocation0 [shape = 'u32[]', space=smem, size = 0x4, offset = 0x4, fixed_abs, tag = 'smem constant byte address 0x4 - core index']
  #allocation1 [shape = 'u32[72,128]{1,0:T(1,128)}', space=vmem, size = 0x9000, scoped, tag = 'internal scratch']
  %s0 = inlined_call_operand.vmem [shape: f32[2,16,128], index: 0, kind: input, shape index: {}, may-alias: {0,7}]
  %s1 = inlined_call_operand.vmem [shape: bf16[128,128], index: 1, kind: input, shape index: {}]
  %s2 = inlined_call_operand.vmem [shape: f32[1,128], index: 2, kind: input, shape index: {}]
  %s3 = inlined_call_operand.vmem [shape: bf16[128,128], index: 3, kind: input, shape index: {}]
  %s4 = inlined_call_operand.vmem [shape: f32[1,128], index: 4, kind: input, shape index: {}]
  %s5 = inlined_call_operand.vmem [shape: bf16[128,128], index: 5, kind: input, shape index: {}]
  %s6 = inlined_call_operand.vmem [shape: f32[1,128], index: 6, kind: input, shape index: {}]
  %s7 = inlined_call_operand.vmem [shape: f32[2,16,128], index: 7, kind: output, shape index: {}, may-alias: {0,7}]
  %s8 = sld [smem:[#allocation0]]
  $region61: #{lca_forward.1} parent=0
    _
  %s10 = ssub.s32 1, %s8
  %s11 = scalar_select 0, %s10, %s8
  loop: start=0, step=1, limit=4
  $region2: #{lca_forward.1} parent=0 // loop_pre_header
    _
  $region3: #{lca_forward.1} parent=0 // loop_header
    %s13 = sphi 0, %s17
    %p14 = scmp.ge.s32.totalorder %s13, 4
    %s23 = sphi 0, %s25
    %s26 = sphi 0, %s23
    %s27 = sphi 0, %s26
    %s43 = sphi 0, %s27
    %s47 = sphi 0, %s47
    %s49 = sphi 0, %s47
    %s50 = sphi 0, %s49
    %s64 = sphi 0, %s50
    %s68 = sphi 0, %s68
    %s70 = sphi 0, %s68
    %s71 = sphi 0, %s70
    %s85 = sphi 0, %s71
    %s89 = sphi 0, %s89
    %s91 = sphi 0, %s89
    %s92 = sphi 0, %s91
    %s106 = sphi 0, %s92
    %s110 = sphi 0, %s110
    %s112 = sphi 0, %s110
    %s113 = sphi 0, %s112
    %s127 = sphi 0, %s113
    %s131 = sphi 0, %s131
    %s133 = sphi 0, %s131
    %s134 = sphi 0, %s133
    %s148 = sphi 0, %s134
    %s152 = sphi 0, %s152
    %s154 = sphi 0, %s152
    %s155 = sphi 0, %s154
    %s169 = sphi 0, %s155
    %s175 = sphi 0, %s177
    %s178 = sphi 0, %s175
    %s179 = sphi 0, %s178
    %s195 = sphi 0, %s179
  $region4: #{lca_forward.1} parent=0 // loop_header_branch
    %16 = sbr.rel (%p14) target = $region8
  $region5: #{lca_forward.1} parent=0 // loop_body
    %s18 = ssub.s32 %s13, 1
    %s19 = ssub.s32 %s13, 2
    %s20 = sadd.s32 %s13, 1
    %s21 = ssub.s32 %s13, %s20
    %p22 = scmp.eq.s32.totalorder %s21, 0
    %s24 = sadd.s32 %s23, 1
    %s25 = scalar_select %p22, %s23, %s24
    %p28 = pneg %p22
    %p29 = scmp.eq.s32.totalorder %s13, 1
    %p30 = por %p28, %p29
    %p31 = scmp.ne.s32.totalorder %s23, %s26
    %p32 = scmp.eq.s32.totalorder %s13, 0
    %p33 = por %p31, %p32
    %p34 = scmp.ne.s32.totalorder %s23, %s26
    %p35 = scmp.eq.s32.totalorder %s18, 1
    %p36 = por %p34, %p35
    %p37 = scmp.ne.s32.totalorder %s26, %s27
    %p38 = scmp.eq.s32.totalorder %s18, 0
    %p39 = por %p37, %p38
    %p40 = scmp.ne.s32.totalorder %s26, %s27
    %p41 = scmp.eq.s32.totalorder %s19, 1
    %p42 = por %p40, %p41
    %p44 = scmp.ne.s32.totalorder %s27, %s43
    %p45 = scmp.eq.s32.totalorder %s19, 0
    %p46 = por %p44, %p45
    %s48 = sadd.s32 %s47, 1
    %p51 = scmp.eq.s32.totalorder %s13, 1
    %p52 = scmp.ne.s32.totalorder %s47, %s49
    %p53 = scmp.eq.s32.totalorder %s13, 0
    %p54 = por %p52, %p53
    %p55 = scmp.ne.s32.totalorder %s47, %s49
    %p56 = scmp.eq.s32.totalorder %s18, 1
    %p57 = por %p55, %p56
    %p58 = scmp.ne.s32.totalorder %s49, %s50
    %p59 = scmp.eq.s32.totalorder %s18, 0
    %p60 = por %p58, %p59
    %p61 = scmp.ne.s32.totalorder %s49, %s50
    %p62 = scmp.eq.s32.totalorder %s19, 1
    %p63 = por %p61, %p62
    %p65 = scmp.ne.s32.totalorder %s50, %s64
    %p66 = scmp.eq.s32.totalorder %s19, 0
    %p67 = por %p65, %p66
    %s69 = sadd.s32 %s68, 1
    %p72 = scmp.eq.s32.totalorder %s13, 1
    %p73 = scmp.ne.s32.totalorder %s68, %s70
    %p74 = scmp.eq.s32.totalorder %s13, 0
    %p75 = por %p73, %p74
    %p76 = scmp.ne.s32.totalorder %s68, %s70
    %p77 = scmp.eq.s32.totalorder %s18, 1
    %p78 = por %p76, %p77
    %p79 = scmp.ne.s32.totalorder %s70, %s71
    %p80 = scmp.eq.s32.totalorder %s18, 0
    %p81 = por %p79, %p80
    %p82 = scmp.ne.s32.totalorder %s70, %s71
    %p83 = scmp.eq.s32.totalorder %s19, 1
    %p84 = por %p82, %p83
    %p86 = scmp.ne.s32.totalorder %s71, %s85
    %p87 = scmp.eq.s32.totalorder %s19, 0
    %p88 = por %p86, %p87
    %s90 = sadd.s32 %s89, 1
    %p93 = scmp.eq.s32.totalorder %s13, 1
    %p94 = scmp.ne.s32.totalorder %s89, %s91
    %p95 = scmp.eq.s32.totalorder %s13, 0
    %p96 = por %p94, %p95
    %p97 = scmp.ne.s32.totalorder %s89, %s91
    %p98 = scmp.eq.s32.totalorder %s18, 1
    %p99 = por %p97, %p98
    %p100 = scmp.ne.s32.totalorder %s91, %s92
    %p101 = scmp.eq.s32.totalorder %s18, 0
    %p102 = por %p100, %p101
    %p103 = scmp.ne.s32.totalorder %s91, %s92
    %p104 = scmp.eq.s32.totalorder %s19, 1
    %p105 = por %p103, %p104
    %p107 = scmp.ne.s32.totalorder %s92, %s106
    %p108 = scmp.eq.s32.totalorder %s19, 0
    %p109 = por %p107, %p108
    %s111 = sadd.s32 %s110, 1
    %p114 = scmp.eq.s32.totalorder %s13, 1
    %p115 = scmp.ne.s32.totalorder %s110, %s112
    %p116 = scmp.eq.s32.totalorder %s13, 0
    %p117 = por %p115, %p116
    %p118 = scmp.ne.s32.totalorder %s110, %s112
    %p119 = scmp.eq.s32.totalorder %s18, 1
    %p120 = por %p118, %p119
    %p121 = scmp.ne.s32.totalorder %s112, %s113
    %p122 = scmp.eq.s32.totalorder %s18, 0
    %p123 = por %p121, %p122
    %p124 = scmp.ne.s32.totalorder %s112, %s113
    %p125 = scmp.eq.s32.totalorder %s19, 1
    %p126 = por %p124, %p125
    %p128 = scmp.ne.s32.totalorder %s113, %s127
    %p129 = scmp.eq.s32.totalorder %s19, 0
    %p130 = por %p128, %p129
    %s132 = sadd.s32 %s131, 1
    %p135 = scmp.eq.s32.totalorder %s13, 1
    %p136 = scmp.ne.s32.totalorder %s131, %s133
    %p137 = scmp.eq.s32.totalorder %s13, 0
    %p138 = por %p136, %p137
    %p139 = scmp.ne.s32.totalorder %s131, %s133
    %p140 = scmp.eq.s32.totalorder %s18, 1
    %p141 = por %p139, %p140
    %p142 = scmp.ne.s32.totalorder %s133, %s134
    %p143 = scmp.eq.s32.totalorder %s18, 0
    %p144 = por %p142, %p143
    %p145 = scmp.ne.s32.totalorder %s133, %s134
    %p146 = scmp.eq.s32.totalorder %s19, 1
    %p147 = por %p145, %p146
    %p149 = scmp.ne.s32.totalorder %s134, %s148
    %p150 = scmp.eq.s32.totalorder %s19, 0
    %p151 = por %p149, %p150
    %s153 = sadd.s32 %s152, 1
    %p156 = scmp.eq.s32.totalorder %s13, 1
    %p157 = scmp.ne.s32.totalorder %s152, %s154
    %p158 = scmp.eq.s32.totalorder %s13, 0
    %p159 = por %p157, %p158
    %p160 = scmp.ne.s32.totalorder %s152, %s154
    %p161 = scmp.eq.s32.totalorder %s18, 1
    %p162 = por %p160, %p161
    %p163 = scmp.ne.s32.totalorder %s154, %s155
    %p164 = scmp.eq.s32.totalorder %s18, 0
    %p165 = por %p163, %p164
    %p166 = scmp.ne.s32.totalorder %s154, %s155
    %p167 = scmp.eq.s32.totalorder %s19, 1
    %p168 = por %p166, %p167
    %p170 = scmp.ne.s32.totalorder %s155, %s169
    %p171 = scmp.eq.s32.totalorder %s19, 0
    %p172 = por %p170, %p171
    %s173 = ssub.s32 %s13, %s20
    %p174 = scmp.eq.s32.totalorder %s173, 0
    %s176 = sadd.s32 %s175, 1
    %s177 = scalar_select %p174, %s175, %s176
    %p180 = pneg %p174
    %p181 = scmp.eq.s32.totalorder %s13, 1
    %p182 = por %p180, %p181
    %p183 = scmp.ne.s32.totalorder %s175, %s178
    %p184 = scmp.eq.s32.totalorder %s13, 0
    %p185 = por %p183, %p184
    %p186 = scmp.ne.s32.totalorder %s175, %s178
    %p187 = scmp.eq.s32.totalorder %s18, 1
    %p188 = por %p186, %p187
    %p189 = scmp.ne.s32.totalorder %s178, %s179
    %p190 = scmp.eq.s32.totalorder %s18, 0
    %p191 = por %p189, %p190
    %p192 = scmp.ne.s32.totalorder %s178, %s179
    %p193 = scmp.eq.s32.totalorder %s19, 1
    %p194 = por %p192, %p193
    %p196 = scmp.ne.s32.totalorder %s179, %s195
    %p197 = scmp.eq.s32.totalorder %s19, 0
    %p198 = por %p196, %p197
    %p199 = scmp.le.s32.totalorder 1, %s13
    %p200 = scmp.lt.s32.totalorder %s13, 3
    %p201 = pnand %p199, %p200
    %p202 = pneg %p201
    // Predicated region
    $region9: #{lca_forward.1} parent=5 // pred_check
      _
    $region10: #{lca_forward.1} parent=5 // pred_check_branch
      %204 = sbr.rel (%p201) target = $region12
    $region11: #{lca_forward.1} parent=5 // pred_region
      %s205 = ssub.s32 %s13, 1
      // Predicated region
      $region13: #{lca_forward.1} parent=11 // pred_check
        %p206 = pneg %p60
      $region14: #{lca_forward.1} parent=11 // pred_check_branch
        %208 = sbr.rel (%p206) target = $region16
      $region15: #{lca_forward.1} parent=11 // pred_region
        _
      $region16: #{lca_forward.1} parent=11 // pred_fallthru
        _
      // Predicated region
      $region17: #{lca_forward.1} parent=11 // pred_check
        %p209 = pneg %p81
      $region18: #{lca_forward.1} parent=11 // pred_check_branch
        %211 = sbr.rel (%p209) target = $region20
      $region19: #{lca_forward.1} parent=11 // pred_region
        _
      $region20: #{lca_forward.1} parent=11 // pred_fallthru
        _
      // Predicated region
      $region21: #{lca_forward.1} parent=11 // pred_check
        %p212 = pneg %p102
      $region22: #{lca_forward.1} parent=11 // pred_check_branch
        %214 = sbr.rel (%p212) target = $region24
      $region23: #{lca_forward.1} parent=11 // pred_region
        _
      $region24: #{lca_forward.1} parent=11 // pred_fallthru
        _
      // Predicated region
      $region25: #{lca_forward.1} parent=11 // pred_check
        %p215 = pneg %p123
      $region26: #{lca_forward.1} parent=11 // pred_check_branch
        %217 = sbr.rel (%p215) target = $region28
      $region27: #{lca_forward.1} parent=11 // pred_region
        _
      $region28: #{lca_forward.1} parent=11 // pred_fallthru
        _
      // Predicated region
      $region29: #{lca_forward.1} parent=11 // pred_check
        %p218 = pneg %p144
      $region30: #{lca_forward.1} parent=11 // pred_check_branch
        %220 = sbr.rel (%p218) target = $region32
      $region31: #{lca_forward.1} parent=11 // pred_region
        _
      $region32: #{lca_forward.1} parent=11 // pred_fallthru
        _
      // Predicated region
      $region33: #{lca_forward.1} parent=11 // pred_check
        %p221 = pneg %p165
      $region34: #{lca_forward.1} parent=11 // pred_check_branch
        %223 = sbr.rel (%p221) target = $region36
      $region35: #{lca_forward.1} parent=11 // pred_region
        _
      $region36: #{lca_forward.1} parent=11 // pred_fallthru
        _
    $region12: #{lca_forward.1} parent=5 // pred_fallthru
      _
    %p224 = scmp.lt.s32.totalorder %s13, 2
    // Predicated region
    $region37: #{lca_forward.1} parent=5 // pred_check
      %p225 = pneg %p224
    $region38: #{lca_forward.1} parent=5 // pred_check_branch
      %227 = sbr.rel (%p225) target = $region40
    $region39: #{lca_forward.1} parent=5 // pred_region
      // Predicated region
      $region41: #{lca_forward.1} parent=39 // pred_check
        %p228 = pneg %p33
      $region42: #{lca_forward.1} parent=39 // pred_check_branch
        %230 = sbr.rel (%p228) target = $region44
      $region43: #{lca_forward.1} parent=39 // pred_region
        %p231 = scmp.lt.s32.totalorder %s13, 1
        %s232 = scalar_select %p231, %s13, 1
        %s233 = smul.addr %s232, 2
        %s234 = smul.addr %s233, 8
        %s235 = scalar_lea.vmem %s0, %s234
      $region44: #{lca_forward.1} parent=39 // pred_fallthru
        _
    $region40: #{lca_forward.1} parent=5 // pred_fallthru
      _
    %p236 = scmp.le.s32.totalorder 1, %s13
    %p237 = scmp.lt.s32.totalorder %s13, 3
    %p238 = pnand %p236, %p237
    %p239 = pneg %p238
    // Predicated region
    $region45: #{lca_forward.1} parent=5 // pred_check
      _
    $region46: #{lca_forward.1} parent=5 // pred_check_branch
      %241 = sbr.rel (%p238) target = $region48
    $region47: #{lca_forward.1} parent=5 // pred_region
      %s242 = ssub.s32 %s13, 1
      %p243 = scmp.lt.s32.totalorder %s18, 1
      %s244 = scalar_select %p243, %s18, 1
      %s245 = smul.addr %s244, 2
      %s246 = smul.addr %s245, 8
      %s247 = scalar_lea.vmem %s0, %s246
      %p248 = pneg %p39
      %p249 = pneg %p36
      %p250 = pneg %p60
      %p251 = pneg %p57
      %p252 = pneg %p81
      %p253 = pneg %p78
      %p254 = pneg %p102
      %p255 = pneg %p99
      %p256 = pneg %p123
      %p257 = pneg %p120
      %p258 = pneg %p144
      %p259 = pneg %p141
      %p260 = pneg %p165
      %p261 = pneg %p162
      %p262 = pneg %p191
      %p263 = pneg %p188
      %p264 = scmp.lt.s32.totalorder %s18, 1
      %s265 = scalar_select %p264, %s18, 1
      %s266 = smul.addr %s265, 2
      %s267 = smul.addr %s266, 8
      %s268 = scalar_lea.vmem %s7, %s267
      %p269 = scmp.lt.s32.totalorder %s18, 1
      %s270 = scalar_select %p269, %s18, 1
      %s271 = smul.addr %s270, 2
      %s272 = smul.addr %s271, 8
      %s273 = scalar_lea.vmem %s0, %s272
      %p274 = scmp.lt.s32.totalorder %s18, 1
      %s275 = scalar_select %p274, %s18, 1
      %s276 = smul.addr %s275, 2
      %s277 = smul.addr %s276, 8
      %s278 = scalar_lea.vmem %s7, %s277
      %v279 = vld [vmem:[%s273] sm:$0xff]
      %v280 = vld [vmem:[%s273 + $0x8] sm:$0xff]
      %v281 = vlaneseq
      %v282 = vshrl.u32 %v281, 7
      %v283 = vadd.s32 %v282, 8
      %vm284 = vcmp.eq.s32.totalorder %v282, 0
      %vm285 = vcmp.eq.s32.totalorder %v283, 0
      %vm286 = vcmp.eq.s32.totalorder %v282, 15
      %vm287 = vcmp.eq.s32.totalorder %v283, 15
      %v288 = vrot.slane %v279, 7
      %v289 = vrot.slane %v280, 7
      %vm290 = vcmp.lt.s32.totalorder %v282, 1
      %v291 = vsel %vm290, %v288, %v289
      %v292 = vsel %vm290, %v289, %v288
      %v293 = vsel %vm284, 1, 0
      %v294 = vsel %vm285, 1, 0
      %vm295 = vcmp.eq.s32.totalorder %v293, 1
      %vm296 = vcmp.eq.s32.totalorder %v294, 1
      %v297 = vsel %vm295, 0.0, %v292
      %v298 = vsel %vm296, 0.0, %v291
      %v299 = vrot.slane %v279, 1
      %v300 = vrot.slane %v280, 1
      %vm301 = vcmp.lt.s32.totalorder %v282, 7
      %v302 = vsel %vm301, %v299, %v300
      %v303 = vsel %vm301, %v300, %v299
      %v304 = vsel %vm286, 1, 0
      %v305 = vsel %vm287, 1, 0
      %vm306 = vcmp.eq.s32.totalorder %v304, 1
      %vm307 = vcmp.eq.s32.totalorder %v305, 1
      %v308 = vsel %vm306, 0.0, %v302
      %v309 = vsel %vm307, 0.0, %v303
      %310 = vrot.lane.b32.xlu0 %v279, 32
      %v311 = vpop.permute.xlu0 %310
      %312 = vrot.lane.b32.xlu0 %v280, 32
      %v313 = vpop.permute.xlu0 %312
      %v314 = vadd.f32 %v297, %v311
      %v315 = vadd.f32 %v298, %v313
      %316 = vrot.lane.b32.xlu0 %v308, 64
      %v317 = vpop.permute.xlu0 %316
      %318 = vrot.lane.b32.xlu0 %v309, 64
      %v319 = vpop.permute.xlu0 %318
      %v320 = vadd.f32 %v314, %v317
      %v321 = vadd.f32 %v315, %v319
      %v322 = vpack.c.bf16 %v321, %v320
      %v323 = vld [vmem:[%s1] sm:$0xf]
      %v324 = vld [vmem:[%s1 + $0x4] sm:$0xf]
      %v325 = vld [vmem:[%s1 + $0x8] sm:$0xf]
      %v326 = vld [vmem:[%s1 + $0xc] sm:$0xf]
      %v327 = vld [vmem:[%s1 + $0x10] sm:$0xf]
      %v328 = vld [vmem:[%s1 + $0x14] sm:$0xf]
      %v329 = vld [vmem:[%s1 + $0x18] sm:$0xf]
      %v330 = vld [vmem:[%s1 + $0x1c] sm:$0xf]
      %v331 = vld [vmem:[%s1 + $0x20] sm:$0xf]
      %v332 = vld [vmem:[%s1 + $0x24] sm:$0xf]
      %v333 = vld [vmem:[%s1 + $0x28] sm:$0xf]
      %v334 = vld [vmem:[%s1 + $0x2c] sm:$0xf]
      %v335 = vld [vmem:[%s1 + $0x30] sm:$0xf]
      %v336 = vld [vmem:[%s1 + $0x34] sm:$0xf]
      %v337 = vld [vmem:[%s1 + $0x38] sm:$0xf]
      %v338 = vld [vmem:[%s1 + $0x3c] sm:$0xf]
      %v339 = vld [vmem:[%s2] sm:$0x1]
      %v341 = vperm.slane %v339, 0
      %v359 = vunpack.c.l.b16 %v323
      %v360 = vunpack.c.l.b16 %v324
      %v361 = vunpack.c.l.b16 %v325
      %v362 = vunpack.c.l.b16 %v326
      %v363 = vunpack.c.l.b16 %v327
      %v364 = vunpack.c.l.b16 %v328
      %v365 = vunpack.c.l.b16 %v329
      %v366 = vunpack.c.l.b16 %v330
      %v367 = vunpack.c.l.b16 %v331
      %v368 = vunpack.c.l.b16 %v332
      %v369 = vunpack.c.l.b16 %v333
      %v370 = vunpack.c.l.b16 %v334
      %v371 = vunpack.c.l.b16 %v335
      %v372 = vunpack.c.l.b16 %v336
      %v373 = vunpack.c.l.b16 %v337
      %v374 = vunpack.c.l.b16 %v338
      %v375 = vpack.c.b16 %v360, %v359
      %v376 = vpack.c.b16 %v362, %v361
      %v377 = vpack.c.b16 %v364, %v363
      %v378 = vpack.c.b16 %v366, %v365
      %v379 = vpack.c.b16 %v368, %v367
      %v380 = vpack.c.b16 %v370, %v369
      %v381 = vpack.c.b16 %v372, %v371
      %v382 = vpack.c.b16 %v374, %v373
      %391 = vmatpush.bf16.msra.mxu0 %v382
      %392 = vmatpush.bf16.msra.mxu0 %v381
      %393 = vmatpush.bf16.msra.mxu0 %v380
      %394 = vmatpush.bf16.msra.mxu0 %v379
      %395 = vmatpush.bf16.msra.mxu0 %v378
      %396 = vmatpush.bf16.msra.mxu0 %v377
      %397 = vmatpush.bf16.msra.mxu0 %v376
      %398 = vmatpush.bf16.msra.mxu0 %v375
      %399 = vmatmul.bf16.gmra.mxu0 %v322
      %v400 = vpop.f32.mrf.mxu0
      %v401 = vadd.f32 %v341, %v400
      %v402 = vpop.f32.mrf.mxu0
      %v403 = vadd.f32 %v341, %v402
      %404 = vdwg.mxu0
      %vm405 = vcmp.gt.f32.partialorder %v401, 0.0
      %vm406 = vcmp.gt.f32.partialorder %v403, 0.0
      %v407 = vmul.f32 %v401, 0.01
      %v408 = vmul.f32 %v403, 0.01
      %v409 = vsel %vm405, %v401, %v407
      %v410 = vsel %vm406, %v403, %v408
      %v411 = vadd.f32 %v409, %v410
      %v412 = vrot.slane %v411, 4
      %v413 = vadd.f32 %v411, %v412
      %v414 = vrot.slane %v413, 2
      %v415 = vadd.f32 %v413, %v414
      %v416 = vrot.slane %v415, 1
      %v417 = vadd.f32 %v415, %v416
      %v418 = vrcp.pop 16.0
      %v419 = vmul.f32 16.0, %v418
      %v420 = vsub.f32 1.0, %v419
      %v421 = vmul.f32 %v418, %v420
      %v422 = vadd.f32 %v418, %v421
      %vm423 = vweird.f32 %v418
      %v424 = vsel %vm423, %v418, %v422
      %v425 = vmul.f32 %v417, %v424
      %v426 = vpack.c.bf16 %v425, %v425
      %v427 = vld [vmem:[%s5] sm:$0xf]
      %v428 = vld [vmem:[%s5 + $0x4] sm:$0xf]
      %v429 = vld [vmem:[%s5 + $0x8] sm:$0xf]
      %v430 = vld [vmem:[%s5 + $0xc] sm:$0xf]
      %v431 = vld [vmem:[%s5 + $0x10] sm:$0xf]
      %v432 = vld [vmem:[%s5 + $0x14] sm:$0xf]
      %v433 = vld [vmem:[%s5 + $0x18] sm:$0xf]
      %v434 = vld [vmem:[%s5 + $0x1c] sm:$0xf]
      %v435 = vld [vmem:[%s5 + $0x20] sm:$0xf]
      %v436 = vld [vmem:[%s5 + $0x24] sm:$0xf]
      %v437 = vld [vmem:[%s5 + $0x28] sm:$0xf]
      %v438 = vld [vmem:[%s5 + $0x2c] sm:$0xf]
      %v439 = vld [vmem:[%s5 + $0x30] sm:$0xf]
      %v440 = vld [vmem:[%s5 + $0x34] sm:$0xf]
      %v441 = vld [vmem:[%s5 + $0x38] sm:$0xf]
      %v442 = vld [vmem:[%s5 + $0x3c] sm:$0xf]
      %v443 = vld [vmem:[%s6] sm:$0x1]
      %v460 = vunpack.c.l.b16 %v427
      %v461 = vunpack.c.l.b16 %v428
      %v462 = vunpack.c.l.b16 %v429
      %v463 = vunpack.c.l.b16 %v430
      %v464 = vunpack.c.l.b16 %v431
      %v465 = vunpack.c.l.b16 %v432
      %v466 = vunpack.c.l.b16 %v433
      %v467 = vunpack.c.l.b16 %v434
      %v468 = vunpack.c.l.b16 %v435
      %v469 = vunpack.c.l.b16 %v436
      %v470 = vunpack.c.l.b16 %v437
      %v471 = vunpack.c.l.b16 %v438
      %v472 = vunpack.c.l.b16 %v439
      %v473 = vunpack.c.l.b16 %v440
      %v474 = vunpack.c.l.b16 %v441
      %v475 = vunpack.c.l.b16 %v442
      %v476 = vpack.c.b16 %v461, %v460
      %v477 = vpack.c.b16 %v463, %v462
      %v478 = vpack.c.b16 %v465, %v464
      %v479 = vpack.c.b16 %v467, %v466
      %v480 = vpack.c.b16 %v469, %v468
      %v481 = vpack.c.b16 %v471, %v470
      %v482 = vpack.c.b16 %v473, %v472
      %v483 = vpack.c.b16 %v475, %v474
      %492 = vmatpush.bf16.msra.mxu0 %v483
      %493 = vmatpush.bf16.msra.mxu0 %v482
      %494 = vmatpush.bf16.msra.mxu0 %v481
      %495 = vmatpush.bf16.msra.mxu0 %v480
      %496 = vmatpush.bf16.msra.mxu0 %v479
      %497 = vmatpush.bf16.msra.mxu0 %v478
      %498 = vmatpush.bf16.msra.mxu0 %v477
      %499 = vmatpush.bf16.msra.mxu0 %v476
      %500 = vmatmul.bf16.gmra.mxu0 %v426
      %v501 = vpop.f32.mrf.mxu0
      %v502 = vadd.f32 %v443, %v501
      %v503 = vpop.f32.mrf.mxu0
      %504 = vdwg.mxu0
      %v505 = vperm.slane %v502, 0
      %v506 = vmul.f32 %v409, %v505
      %v507 = vmul.f32 %v410, %v505
      %v508 = vrot.slane %v506, 7
      %v509 = vrot.slane %v507, 7
      %v510 = vsel %vm290, %v508, %v509
      %v511 = vsel %vm290, %v509, %v508
      %v512 = vsel %vm295, 0.0, %v511
      %v513 = vsel %vm296, 0.0, %v510
      %v514 = vrot.slane %v506, 1
      %v515 = vrot.slane %v507, 1
      %v516 = vsel %vm301, %v514, %v515
      %v517 = vsel %vm301, %v515, %v514
      %v518 = vsel %vm306, 0.0, %v516
      %v519 = vsel %vm307, 0.0, %v517
      %520 = vrot.lane.b32.xlu0 %v506, 32
      %v521 = vpop.permute.xlu0 %520
      %522 = vrot.lane.b32.xlu0 %v507, 32
      %v523 = vpop.permute.xlu0 %522
      %v524 = vadd.f32 %v512, %v521
      %v525 = vadd.f32 %v513, %v523
      %526 = vrot.lane.b32.xlu0 %v518, 64
      %v527 = vpop.permute.xlu0 %526
      %528 = vrot.lane.b32.xlu0 %v519, 64
      %v529 = vpop.permute.xlu0 %528
      %v530 = vadd.f32 %v524, %v527
      %v531 = vadd.f32 %v525, %v529
      %v532 = vpack.c.bf16 %v531, %v530
      %v533 = vld [vmem:[%s3] sm:$0xf]
      %v534 = vld [vmem:[%s3 + $0x4] sm:$0xf]
      %v535 = vld [vmem:[%s3 + $0x8] sm:$0xf]
      %v536 = vld [vmem:[%s3 + $0xc] sm:$0xf]
      %v537 = vld [vmem:[%s3 + $0x10] sm:$0xf]
      %v538 = vld [vmem:[%s3 + $0x14] sm:$0xf]
      %v539 = vld [vmem:[%s3 + $0x18] sm:$0xf]
      %v540 = vld [vmem:[%s3 + $0x1c] sm:$0xf]
      %v541 = vld [vmem:[%s3 + $0x20] sm:$0xf]
      %v542 = vld [vmem:[%s3 + $0x24] sm:$0xf]
      %v543 = vld [vmem:[%s3 + $0x28] sm:$0xf]
      %v544 = vld [vmem:[%s3 + $0x2c] sm:$0xf]
      %v545 = vld [vmem:[%s3 + $0x30] sm:$0xf]
      %v546 = vld [vmem:[%s3 + $0x34] sm:$0xf]
      %v547 = vld [vmem:[%s3 + $0x38] sm:$0xf]
      %v548 = vld [vmem:[%s3 + $0x3c] sm:$0xf]
      %v549 = vld [vmem:[%s4] sm:$0x1]
      %v551 = vperm.slane %v549, 0
      %v569 = vunpack.c.l.b16 %v533
      %v570 = vunpack.c.l.b16 %v534
      %v571 = vunpack.c.l.b16 %v535
      %v572 = vunpack.c.l.b16 %v536
      %v573 = vunpack.c.l.b16 %v537
      %v574 = vunpack.c.l.b16 %v538
      %v575 = vunpack.c.l.b16 %v539
      %v576 = vunpack.c.l.b16 %v540
      %v577 = vunpack.c.l.b16 %v541
      %v578 = vunpack.c.l.b16 %v542
      %v579 = vunpack.c.l.b16 %v543
      %v580 = vunpack.c.l.b16 %v544
      %v581 = vunpack.c.l.b16 %v545
      %v582 = vunpack.c.l.b16 %v546
      %v583 = vunpack.c.l.b16 %v547
      %v584 = vunpack.c.l.b16 %v548
      %v585 = vpack.c.b16 %v570, %v569
      %v586 = vpack.c.b16 %v572, %v571
      %v587 = vpack.c.b16 %v574, %v573
      %v588 = vpack.c.b16 %v576, %v575
      %v589 = vpack.c.b16 %v578, %v577
      %v590 = vpack.c.b16 %v580, %v579
      %v591 = vpack.c.b16 %v582, %v581
      %v592 = vpack.c.b16 %v584, %v583
      %601 = vmatpush.bf16.msra.mxu0 %v592
      %602 = vmatpush.bf16.msra.mxu0 %v591
      %603 = vmatpush.bf16.msra.mxu0 %v590
      %604 = vmatpush.bf16.msra.mxu0 %v589
      %605 = vmatpush.bf16.msra.mxu0 %v588
      %606 = vmatpush.bf16.msra.mxu0 %v587
      %607 = vmatpush.bf16.msra.mxu0 %v586
      %608 = vmatpush.bf16.msra.mxu0 %v585
      %609 = vmatmul.bf16.gmra.mxu0 %v532
      %v610 = vpop.f32.mrf.mxu0
      %v611 = vadd.f32 %v551, %v610
      %v612 = vpop.f32.mrf.mxu0
      %v613 = vadd.f32 %v551, %v612
      %614 = vdwg.mxu0
      %v615 = vadd.f32 %v279, %v611
      %v616 = vadd.f32 %v280, %v613
      %617 = vst [vmem:[%s278] sm:$0xff] %v615
      %618 = vst [vmem:[%s278 + $0x8] sm:$0xff] %v616
      %p619 = scmp.lt.s32.totalorder %s18, 1
      %s620 = scalar_select %p619, %s18, 1
      %s621 = smul.addr %s620, 2
      %s622 = smul.addr %s621, 8
      %s623 = scalar_lea.vmem %s7, %s622
      // Predicated region
      $region49: #{lca_forward.1} parent=47 // pred_check
        %p624 = pneg %p188
      $region50: #{lca_forward.1} parent=47 // pred_check_branch
        %626 = sbr.rel (%p624) target = $region52
      $region51: #{lca_forward.1} parent=47 // pred_region
        _
      $region52: #{lca_forward.1} parent=47 // pred_fallthru
        _
    $region48: #{lca_forward.1} parent=5 // pred_fallthru
      _
    %p627 = scmp.le.s32.totalorder 2, %s13
    // Predicated region
    $region53: #{lca_forward.1} parent=5 // pred_check
      %p628 = pneg %p627
    $region54: #{lca_forward.1} parent=5 // pred_check_branch
      %630 = sbr.rel (%p628) target = $region56
    $region55: #{lca_forward.1} parent=5 // pred_region
      %s631 = ssub.s32 %s13, 2
      // Predicated region
      $region57: #{lca_forward.1} parent=55 // pred_check
        %p632 = pneg %p194
      $region58: #{lca_forward.1} parent=55 // pred_check_branch
        %634 = sbr.rel (%p632) target = $region60
      $region59: #{lca_forward.1} parent=55 // pred_region
        %p635 = scmp.lt.s32.totalorder %s19, 1
        %s636 = scalar_select %p635, %s19, 1
        %s637 = smul.addr %s636, 2
        %s638 = smul.addr %s637, 8
        %s639 = scalar_lea.vmem %s7, %s638
      $region60: #{lca_forward.1} parent=55 // pred_fallthru
        _
    $region56: #{lca_forward.1} parent=5 // pred_fallthru
      _
  $region6: #{lca_forward.1} parent=0 // loop_footer
    %s17 = sadd.s32 1, %s13
  $region7: #{lca_forward.1} parent=0 // loop_footer_branch
    %12 = sbr.rel target = $region3
  $region8: #{lca_forward.1} parent=0 // loop_exit
    _

</llo_original>
